<compile_context>
chip_gen: v7x
topology: tpu7x:2x2x1
jax: 0.10.0
libtpu: 0.0.40
codegen_flags: <defaults>
</compile_context>

<pallas_src>
import jax
import jax.numpy as jnp
from jax.experimental import pallas as pl
from jax.experimental.pallas import tpu as pltpu


def _gcn_kernel(ahat_ref, xw1_ref, m_ref, b1_ref, out_ref, h1_acc):
    k = pl.program_id(1)

    @pl.when(k == 0)
    def _():
        h1_acc[...] = jnp.zeros_like(h1_acc)

    # One MXU matmul per tile: accumulate the layer-1 pre-activation.
    # bf16 streamed operands, f32 accumulation.
    h1_acc[...] += jnp.dot(ahat_ref[...], xw1_ref[...],
                           preferred_element_type=jnp.float32)        # (tm, Hp)

    @pl.when(k == pl.num_programs(1) - 1)
    def _():
        h1 = jnp.maximum(h1_acc[...] + b1_ref[...], 0.0)              # (tm, Hp)
        # mean_nodes + 2nd aggregation folded into a weighted row-sum:
        # partial pooled row for this node tile (VPU multiply + XLU sublane reduce).
        out_ref[...] = jnp.sum(m_ref[...] * h1, axis=0, keepdims=True)  # (1, Hp)


def _round_up(x, m):
    return ((x + m - 1) // m) * m


def _cdiv(a, b):
    return (a + b - 1) // b


def gcn_forward(ahat, x, w1, b1, w2, b2, *, row_tile=512, col_tile=2048):
    N, F = x.shape
    H = w1.shape[1]
    C = w2.shape[1]
    f32 = jnp.float32
    bf16 = jnp.bfloat16

    Hp = _round_up(H, 128)
    Np8 = _round_up(N, 8)

    # Row tiling: near-equal, 8-aligned tiles (avoids tiny tiles for small N and
    # up-to-row_tile dead padding for N just over it).
    n_i = _cdiv(Np8, row_tile)
    tm = _round_up(_cdiv(Np8, n_i), 8)
    Np_r = n_i * tm

    # Column tiling: one full-width tile for small graphs, 128-lane-aligned tiles
    # otherwise, so VMEM footprint stays independent of graph size.
    if Np8 <= col_tile:
        n_k, tk = 1, Np8
    else:
        n_k = _cdiv(N, col_tile)
        tk = _round_up(_cdiv(N, n_k), 128)
    Np_c = n_k * tk

    # Stream operands in bf16 (halves HBM bytes; MXU-native input on v5e/v6e/v7x).
    # Pad only the ragged edge, fused with the cast.
    ahat_bf = jnp.pad(ahat.astype(bf16), ((0, Np_r - N), (0, Np_c - N)))
    xw1 = x.astype(f32) @ w1.astype(f32)                               # hoisted X @ W1
    xw1_bf = jnp.pad(xw1, ((0, Np_c - N), (0, Hp - H))).astype(bf16)
    b1_p = jnp.pad(b1.reshape(1, H).astype(f32), ((0, 0), (0, Hp - H)))

    # m = (1/N_true) * colsum(Ahat); padded entries are zero so padded node rows
    # never contribute to the pooled mean.
    m = jnp.pad((jnp.sum(ahat.astype(f32), axis=0) / f32(N)).reshape(N, 1),
                ((0, Np_r - N), (0, 0)))

    partials = pl.pallas_call(
        _gcn_kernel,
        out_shape=jax.ShapeDtypeStruct((n_i, Hp), f32),
        grid=(n_i, n_k),
        in_specs=[
            pl.BlockSpec((tm, tk), lambda i, k: (i, k)),   # Ahat tile (streamed, bf16)
            pl.BlockSpec((tk, Hp), lambda i, k: (k, 0)),   # X@W1 tile (bf16)
            pl.BlockSpec((tm, 1), lambda i, k: (i, 0)),    # pooling weights m (f32)
            pl.BlockSpec((1, Hp), lambda i, k: (0, 0)),    # b1 (f32, tiny resident)
        ],
        out_specs=pl.BlockSpec((1, Hp), lambda i, k: (i, 0)),  # per-row-tile partial pool
        scratch_shapes=[pltpu.VMEM((tm, Hp), f32)],            # layer-1 pre-activation acc
        compiler_params=pltpu.CompilerParams(
            # rows are independent partial outputs (v7x megacore split);
            # columns are the reduction axis.
            dimension_semantics=("parallel", "arbitrary")),
    )(ahat_bf, xw1_bf, m, b1_p)

    # Finalize in the wrapper: C is tiny (>=97% padding at C=4 if done in-kernel).
    pooled = jnp.sum(partials, axis=0, keepdims=True)[:, :H]           # (1, H)
    out = pooled @ w2.astype(f32) + b2.reshape(1, C).astype(f32)
    return jnp.maximum(out, 0.0)


def build_normalized_adjacency(key, n_nodes):
    # Random symmetric 0/1 adjacency, then Ahat = D^{-1/2} A D^{-1/2}
    # (degrees clamped to >= 1, as DGL GraphConv does).
    a = (jax.random.uniform(key, (n_nodes, n_nodes)) < 0.3).astype(jnp.float32)
    a = jnp.maximum(a, a.T)
    a = a * (1.0 - jnp.eye(n_nodes, dtype=jnp.float32))     # no self loops
    deg = jnp.clip(a.sum(axis=1), 1.0, None)
    dinv_sqrt = 1.0 / jnp.sqrt(deg)
    ahat = a * dinv_sqrt[:, None] * dinv_sqrt[None, :]
    return ahat


if __name__ == "__main__":
    # Small, deterministic problem sizes.
    n_nodes = 16
    in_feats = 8
    h_feats = 32
    num_classes = 4

    key = jax.random.PRNGKey(0)
    k_adj, k_x, k_w1, k_w2 = jax.random.split(key, 4)

    ahat = build_normalized_adjacency(k_adj, n_nodes)
    x = jax.random.normal(k_x, (n_nodes, in_feats), dtype=jnp.float32)

    # Glorot-uniform-ish deterministic init (DGL GraphConv default is xavier_uniform).
    lim1 = (6.0 / (in_feats + h_feats)) ** 0.5
    w1 = jax.random.uniform(k_w1, (in_feats, h_feats), minval=-lim1, maxval=lim1,
                            dtype=jnp.float32)
    b1 = jnp.zeros((1, h_feats), dtype=jnp.float32)

    lim2 = (6.0 / (h_feats + num_classes)) ** 0.5
    w2 = jax.random.uniform(k_w2, (h_feats, num_classes), minval=-lim2, maxval=lim2,
                            dtype=jnp.float32)
    b2 = jnp.zeros((1, num_classes), dtype=jnp.float32)

    out = gcn_forward(ahat, x, w1, b1, w2, b2)
    jax.block_until_ready(out)

    # Pure-JAX f32 reference (original, un-folded formulation) for sanity.
    h1_ref = jnp.maximum(ahat @ (x @ w1) + b1, 0.0)
    h2_ref = ahat @ (h1_ref @ w2) + b2
    ref = jnp.maximum(jnp.mean(h2_ref, axis=0, keepdims=True), 0.0)
    assert out.shape == (1, num_classes)
    # bf16-streamed operands with f32 accumulation -> loosened tolerance.
    assert jnp.allclose(out, ref, atol=2e-2, rtol=2e-2)

    print("KERNEL_OK")
</pallas_src>

<mosaic_0001>
module attributes {stable_mosaic.version = 11 : i64} {
  func.func @_gcn_kernel(%arg0: i32, %arg1: i32, %arg2: memref<16x16xbf16, #tpu.memory_space<vmem>>, %arg3: memref<16x128xbf16, #tpu.memory_space<vmem>>, %arg4: memref<16x1xf32, #tpu.memory_space<vmem>>, %arg5: memref<1x128xf32, #tpu.memory_space<vmem>>, %arg6: memref<1x128xf32, #tpu.memory_space<vmem>>, %arg7: memref<16x128xf32, #tpu.memory_space<vmem>>) attributes {dimension_semantics = [#tpu.dimension_semantics<parallel>, #tpu.dimension_semantics<arbitrary>], iteration_bounds = array<i64: 1, 1>, scalar_prefetch = 0 : i64, scratch_operands = 1 : i64, tpu.core_type = #tpu.core_type<tc>, window_params = [{transform_indices = @transform_0, window_bounds = array<i64: 16, 16>}, {transform_indices = @transform_1, window_bounds = array<i64: 16, 128>}, {transform_indices = @transform_2, window_bounds = array<i64: 16, 1>}, {pipeline_mode = #tpu.pipeline_mode<synchronous>, transform_indices = @transform_3, window_bounds = array<i64: 1, 128>}, {transform_indices = @transform_4, window_bounds = array<i64: 1, 128>}]} {
    %c0_i32 = arith.constant 0 : i32
    %0 = arith.cmpi eq, %arg1, %c0_i32 : i32
    %1 = arith.extui %0 : i1 to i32
    %c0_i32_0 = arith.constant 0 : i32
    %2 = arith.cmpi ne, %1, %c0_i32_0 : i32
    scf.if %2 {
      %cst_10 = arith.constant 0.000000e+00 : f32
      %12 = vector.broadcast %cst_10 : f32 to vector<16x128xf32>
      %c0_11 = arith.constant 0 : index
      %c0_12 = arith.constant 0 : index
      %13 = vector.load %arg7[%c0_11, %c0_12] : memref<16x128xf32, #tpu.memory_space<vmem>>, vector<16x128xf32>
      tpu.vector_store %arg7[%c0_11, %c0_12], %12 {strides = array<i32>} : memref<16x128xf32, #tpu.memory_space<vmem>>, vector<16x128xf32>,
    } else {
    }
    %c0 = arith.constant 0 : index
    %c0_1 = arith.constant 0 : index
    %3 = vector.load %arg7[%c0, %c0_1] : memref<16x128xf32, #tpu.memory_space<vmem>>, vector<16x128xf32>
    %c0_2 = arith.constant 0 : index
    %c0_3 = arith.constant 0 : index
    %4 = vector.load %arg2[%c0_2, %c0_3] : memref<16x16xbf16, #tpu.memory_space<vmem>>, vector<16x16xbf16>
    %c0_4 = arith.constant 0 : index
    %c0_5 = arith.constant 0 : index
    %5 = vector.load %arg3[%c0_4, %c0_5] : memref<16x128xbf16, #tpu.memory_space<vmem>>, vector<16x128xbf16>
    %cst = arith.constant dense<0.000000e+00> : vector<16x128xf32>
    %6 = tpu.matmul %4, %5, %cst {dimension_numbers = #tpu.dot_dimension_numbers<[1], [0], [0], [1], [0, 0, 1, 1], [], []>} : vector<16x16xbf16>, vector<16x128xbf16>, vector<16x128xf32> -> vector<16x128xf32>
    %7 = arith.addf %3, %6 : vector<16x128xf32>
    %c0_6 = arith.constant 0 : index
    %c0_7 = arith.constant 0 : index
    %8 = vector.load %arg7[%c0_6, %c0_7] : memref<16x128xf32, #tpu.memory_space<vmem>>, vector<16x128xf32>
    tpu.vector_store %arg7[%c0_6, %c0_7], %7 {strides = array<i32>} : memref<16x128xf32, #tpu.memory_space<vmem>>, vector<16x128xf32>,
    %c0_i32_8 = arith.constant 0 : i32
    %9 = arith.cmpi eq, %arg1, %c0_i32_8 : i32
    %10 = arith.extui %9 : i1 to i32
    %c0_i32_9 = arith.constant 0 : i32
    %11 = arith.cmpi ne, %10, %c0_i32_9 : i32
    scf.if %11 {
      %c0_10 = arith.constant 0 : index
      %c0_11 = arith.constant 0 : index
      %12 = vector.load %arg7[%c0_10, %c0_11] : memref<16x128xf32, #tpu.memory_space<vmem>>, vector<16x128xf32>
      %c0_12 = arith.constant 0 : index
      %c0_13 = arith.constant 0 : index
      %13 = vector.load %arg5[%c0_12, %c0_13] : memref<1x128xf32, #tpu.memory_space<vmem>>, vector<1x128xf32>
      %14 = vector.broadcast %13 : vector<1x128xf32> to vector<16x128xf32>
      %15 = arith.addf %12, %14 : vector<16x128xf32>
      %cst_14 = arith.constant 0.000000e+00 : f32
      %16 = vector.broadcast %cst_14 : f32 to vector<16x128xf32>
      %17 = arith.maximumf %15, %16 : vector<16x128xf32>
      %c0_15 = arith.constant 0 : index
      %c0_16 = arith.constant 0 : index
      %18 = vector.load %arg4[%c0_15, %c0_16] : memref<16x1xf32, #tpu.memory_space<vmem>>, vector<16x1xf32>
      %19 = vector.broadcast %18 : vector<16x1xf32> to vector<16x128xf32>
      %20 = arith.mulf %19, %17 : vector<16x128xf32>
      %cst_17 = arith.constant dense<0.000000e+00> : vector<128xf32>
      %21 = vector.multi_reduction <add>, %20, %cst_17 [0] : vector<16x128xf32> to vector<128xf32>
      %22 = vector.shape_cast %21 : vector<128xf32> to vector<1x128xf32>
      %c0_18 = arith.constant 0 : index
      %c0_19 = arith.constant 0 : index
      %23 = vector.load %arg6[%c0_18, %c0_19] : memref<1x128xf32, #tpu.memory_space<vmem>>, vector<1x128xf32>
      tpu.vector_store %arg6[%c0_18, %c0_19], %22 {strides = array<i32>} : memref<1x128xf32, #tpu.memory_space<vmem>>, vector<1x128xf32>,
    } else {
    }
    return
  }
  func.func @transform_0(%arg0: i32, %arg1: i32) -> (i32, i32) {
    %c0_i32 = arith.constant 0 : i32
    return %arg0, %arg1 : i32, i32
  }
  func.func @transform_1(%arg0: i32, %arg1: i32) -> (i32, i32) {
    %c0_i32 = arith.constant 0 : i32
    %c0_i32_0 = arith.constant 0 : i32
    return %arg1, %c0_i32 : i32, i32
  }
  func.func @transform_2(%arg0: i32, %arg1: i32) -> (i32, i32) {
    %c0_i32 = arith.constant 0 : i32
    %c0_i32_0 = arith.constant 0 : i32
    return %arg0, %c0_i32 : i32, i32
  }
  func.func @transform_3(%arg0: i32, %arg1: i32) -> (i32, i32) {
    %c0_i32 = arith.constant 0 : i32
    %c0_i32_0 = arith.constant 0 : i32
    %c0_i32_1 = arith.constant 0 : i32
    return %c0_i32, %c0_i32_0 : i32, i32
  }
  func.func @transform_4(%arg0: i32, %arg1: i32) -> (i32, i32) {
    %c0_i32 = arith.constant 0 : i32
    %c0_i32_0 = arith.constant 0 : i32
    return %arg0, %c0_i32 : i32, i32
  }
}

</mosaic_0001>

<llo_original>
// kernel: tpu_custom_call.1
$region0: #{tpu_custom_call.1}
  #allocation0 [shape = 'u32[]', space=smem, size = 0x4, offset = 0x4, fixed_abs, tag = 'smem constant byte address 0x4 - core index']
  #allocation1 [shape = 'u32[144,128]{1,0:T(1,128)}', space=vmem, size = 0x12000, scoped, tag = 'internal scratch']
  #allocation2 [shape = 'f32[16,128]{1,0:T(8,128)}', space=vmem, size = 0x2000, scoped, tag = 'scratch operand']
  %s0 = inlined_call_operand.vmem [shape: bf16[16,16], index: 0, kind: input, shape index: {}]
  %s1 = inlined_call_operand.vmem [shape: bf16[16,128], index: 1, kind: input, shape index: {}]
  %s2 = inlined_call_operand.vmem [shape: f32[16,1], index: 2, kind: input, shape index: {}]
  %s3 = inlined_call_operand.vmem [shape: f32[1,128], index: 3, kind: input, shape index: {}]
  %s4 = inlined_call_operand.hbm [shape: f32[1,128], index: 4, kind: output, shape index: {}]
  %s5 = sld [smem:[#allocation0]]
  $region34: #{tpu_custom_call.1} parent=0
    _
  %s7 = ssub.s32 1, %s5
  %s8 = scalar_select 0, %s7, %s5
  $region1: #{tpu_custom_call.1} parent=0
    #allocation3 [shape = 'u8[512]{0}', space=vmem, size = 0x400, scoped, tag = 'output window, operand 0, single buffered']
    #allocation4 [shape = 's32[1]{0}', space=sflag, size = 0x4, scoped, tag = 'scoped memory for tpu_custom_call.1']
    %9 = vsyncpa [#allocation4], 0
    // Predicated region
    $region2: #{tpu_custom_call.1} parent=1 // pred_check
      _
    $region3: #{tpu_custom_call.1} parent=1 // pred_check_branch
      %11 = sbr.rel (0) target = $region5
    $region4: #{tpu_custom_call.1} parent=1 // pred_region
      _
    $region5: #{tpu_custom_call.1} parent=1 // pred_fallthru
      _
    // Predicated region
    $region6: #{tpu_custom_call.1} parent=1 // pred_check
      _
    $region7: #{tpu_custom_call.1} parent=1 // pred_check_branch
      %13 = sbr.rel (0) target = $region9
    $region8: #{tpu_custom_call.1} parent=1 // pred_region
      _
    $region9: #{tpu_custom_call.1} parent=1 // pred_fallthru
      _
    // Predicated region
    $region10: #{tpu_custom_call.1} parent=1 // pred_check
      _
    $region11: #{tpu_custom_call.1} parent=1 // pred_check_branch
      %15 = sbr.rel (0) target = $region13
    $region12: #{tpu_custom_call.1} parent=1 // pred_region
      _
    $region13: #{tpu_custom_call.1} parent=1 // pred_fallthru
      _
    // Predicated region
    $region14: #{tpu_custom_call.1} parent=1 // pred_check
      _
    $region15: #{tpu_custom_call.1} parent=1 // pred_check_branch
      %17 = sbr.rel (0) target = $region17
    $region16: #{tpu_custom_call.1} parent=1 // pred_region
      _
    $region17: #{tpu_custom_call.1} parent=1 // pred_fallthru
      _
    %p19 = scmp.eq.s32.totalorder 0, 0
    // Predicated region
    $region18: #{tpu_custom_call.1} parent=1 // pred_check
      %p20 = pneg %p19
    $region19: #{tpu_custom_call.1} parent=1 // pred_check_branch
      %22 = sbr.rel (%p20) target = $region21
    $region20: #{tpu_custom_call.1} parent=1 // pred_region
      %23 = vst [vmem:[#allocation2] sm:$0xff] 0.0
      %24 = vst [vmem:[#allocation2 + $0x8] sm:$0xff] 0.0
    $region21: #{tpu_custom_call.1} parent=1 // pred_fallthru
      _
    %v25 = vld [vmem:[#allocation2] sm:$0xff]
    %v26 = vld [vmem:[#allocation2 + $0x8] sm:$0xff]
    %v27 = vld [vmem:[%s0] sm:$0xf]
    %v28 = vld [vmem:[%s0 + $0x4] sm:$0xf]
    %v29 = vld [vmem:[%s1] sm:$0xf]
    %v30 = vld [vmem:[%s1 + $0x4] sm:$0xf]
    %v33 = vunpack.c.l.b16 %v27
    %v34 = vunpack.c.l.b16 %v28
    %v35 = vpack.c.b16 %v34, %v33
    %v38 = vunpack.c.l.b16 %v29
    %v39 = vunpack.c.l.b16 %v30
    %v40 = vpack.c.b16 %v39, %v38
    %vm42 = vcmask 130048
    %v44 = vsel %vm42, %v35, 0
    %46 = vmatprep.subr.bf16.mxu0 0
    %47 = vmatpush1.bf16.msra.mxu0 %v40
    %48 = vmatprep.subr.bf16.mxu0 0
    %49 = vmatpush1.bf16.msra.mxu0 0
    %50 = vmatprep.subr.bf16.mxu0 0
    %51 = vmatpush1.bf16.msra.mxu0 0
    %52 = vmatprep.subr.bf16.mxu0 0
    %53 = vmatpush1.bf16.msra.mxu0 0
    %54 = vmatprep.subr.bf16.mxu0 0
    %55 = vmatpush1.bf16.msra.mxu0 0
    %56 = vmatprep.subr.bf16.mxu0 0
    %57 = vmatpush1.bf16.msra.mxu0 0
    %58 = vmatprep.subr.bf16.mxu0 0
    %59 = vmatpush1.bf16.msra.mxu0 0
    %60 = vmatprep.subr.bf16.mxu0 0
    %61 = vmatpush1.bf16.msra.mxu0 0
    %62 = vmatprep.subr.bf16.mxu0 0
    %63 = vmatpush1.bf16.msra.mxu0 0
    %64 = vmatprep.subr.bf16.mxu0 0
    %65 = vmatpush1.bf16.msra.mxu0 0
    %66 = vmatprep.subr.bf16.mxu0 0
    %67 = vmatpush1.bf16.msra.mxu0 0
    %68 = vmatprep.subr.bf16.mxu0 0
    %69 = vmatpush1.bf16.msra.mxu0 0
    %70 = vmatprep.subr.bf16.mxu0 0
    %71 = vmatpush1.bf16.msra.mxu0 0
    %72 = vmatprep.subr.bf16.mxu0 0
    %73 = vmatpush1.bf16.msra.mxu0 0
    %74 = vmatprep.subr.bf16.mxu0 0
    %75 = vmatpush1.bf16.msra.mxu0 0
    %76 = vmatprep.subr.bf16.mxu0 0
    %77 = vmatpush1.bf16.msra.mxu0 0
    %78 = vmatprep.mubr.bf16.mxu0 0
    %79 = vmatmul.mubr.bf16.gmra.mrb[0].mxu0 %v44
    %v80 = vpop.f32.mrb[0].mxu0
    %v81 = vadd.f32 0.0, %v80
    %v82 = vpop.f32.mrb[0].mxu0
    %v83 = vpop.f32.mrb[0].mxu0
    %v84 = vadd.f32 0.0, %v83
    %v85 = vpop.f32.mrb[0].mxu0
    %86 = vdwg.mxu0
    %v87 = vadd.f32 %v25, %v81
    %v88 = vadd.f32 %v26, %v84
    %89 = vst [vmem:[#allocation2] sm:$0xff] %v87
    %90 = vst [vmem:[#allocation2 + $0x8] sm:$0xff] %v88
    // Predicated region
    $region22: #{tpu_custom_call.1} parent=1 // pred_check
      %p91 = pneg %p19
    $region23: #{tpu_custom_call.1} parent=1 // pred_check_branch
      %93 = sbr.rel (%p91) target = $region25
    $region24: #{tpu_custom_call.1} parent=1 // pred_region
      %v94 = vld [vmem:[#allocation2] sm:$0xff]
      %v95 = vld [vmem:[#allocation2 + $0x8] sm:$0xff]
      %v96 = vld [vmem:[%s3] sm:$0x1]
      %v98 = vlaneseq
      %v99 = vshrl.u32 %v98, 7
      %v100 = vsub.s32 0, %v99
      %v101 = vrot.slane %v96, %v100
      %v103 = vadd.f32 %v94, %v101
      %v104 = vadd.f32 %v95, %v101
      %v105 = vmax.f32 %v103, 0.0
      %v106 = vmax.f32 %v104, 0.0
      %v107 = vld [vmem:[%s2] sm:$0xff]
      %v108 = vld [vmem:[%s2 + $0x8] sm:$0xff]
      %110 = vset.pattern.permute.xlu0 0
      %111 = vperm.xlu0 %110, %v107
      %v112 = vpop.permute.xlu0 %111
      %115 = vset.pattern.permute.xlu0 0
      %116 = vperm.xlu0 %115, %v108
      %v117 = vpop.permute.xlu0 %116
      %v119 = vmul.f32 %v112, %v105
      %v120 = vmul.f32 %v117, %v106
      %v121 = vadd.f32 %v119, %v120
      %v122 = vrot.slane %v121, 4
      %v123 = vadd.f32 %v121, %v122
      %v124 = vrot.slane %v123, 2
      %v125 = vadd.f32 %v123, %v124
      %v126 = vrot.slane %v125, 1
      %v127 = vadd.f32 %v125, %v126
      %128 = vst [vmem:[#allocation3] sm:$0x1] %v127
    $region25: #{tpu_custom_call.1} parent=1 // pred_fallthru
      _
    // Predicated region
    $region26: #{tpu_custom_call.1} parent=1 // pred_check
      _
    $region27: #{tpu_custom_call.1} parent=1 // pred_check_branch
      %130 = sbr.rel (0) target = $region29
    $region28: #{tpu_custom_call.1} parent=1 // pred_region
      %s132 = ssub.s32 16, 16
      %133 = vsyncadd [#allocation4], %s132
      %s135 = sshll.u32 [#allocation3], 4
      %s136 = int_to_ptr.vmem [resolvable:$true] %s135
      %138 = dma.vmem_to_hbm [thread:$0]  %s136, 16, %s4, [#allocation4]
    $region29: #{tpu_custom_call.1} parent=1 // pred_fallthru
      _
    // Predicated region
    $region30: #{tpu_custom_call.1} parent=1 // pred_check
      _
    $region31: #{tpu_custom_call.1} parent=1 // pred_check_branch
      %140 = sbr.rel (0) target = $region33
    $region32: #{tpu_custom_call.1} parent=1 // pred_region
      %141 = dma.done [#allocation4], 16
    $region33: #{tpu_custom_call.1} parent=1 // pred_fallthru
      _
    %142 = vsyncpa [#allocation4], 1

</llo_original>
